<compile_context>
chip_gen: v5e
topology: v5e:2x2
jax: 0.10.0
libtpu: 0.0.40
codegen_flags: <defaults>
</compile_context>

<pallas_src>
import functools

import jax
import jax.numpy as jnp
from jax.experimental import pallas as pl
from jax.experimental.pallas import tpu as pltpu

_LANE = 128
_SUB = 8
_CAP_ROWS = 4096        # max rows per input block: 4096*128*4 B = 2 MiB f32
_CHUNK_ROWS = 64        # rows per streaming chunk: 8 f32 vregs per operand
_MAX_BN = 128           # max samples packed into one grid step (small-D case)
_VMEM_LIMIT = 40 * 1024 * 1024


def _choose_tiling(n, d):
    """Returns (rows, tile_r, bn, num_k)."""
    rows = -(-d // _LANE)
    if rows > _CAP_ROWS:
        # Large D: one sample per block, tile the row axis (cdiv grid).
        return rows, _CAP_ROWS, 1, -(-rows // _CAP_ROWS)
    # Small/medium D: whole sample fits in one tile; pack bn samples/step.
    bn = max(1, min(n, _CAP_ROWS // rows, _MAX_BN))
    return rows, rows, bn, 1


def _make_kernel(bn, tile_r, num_k, d_valid, needs_mask, has_weight):
    """Builds the partial-sum kernel specialized on tiling / weight presence."""
    tile_elems = tile_r * _LANE
    out_accumulates = num_k > 1           # note: num_k > 1 implies bn == 1

    def fold_rows(vals, acc):
        """acc (8,128) += per-lane-column fold of vals (R,128); R is static."""
        r = vals.shape[0]
        r8 = (r // _SUB) * _SUB
        if r8:
            acc = acc + jnp.sum(
                vals[:r8].reshape(r8 // _SUB, _SUB, _LANE), axis=0)
        if r - r8:
            # Sub-8-row tail (only for small ragged row counts): reduce the
            # few rows and deposit into accumulator row 0 via a select.
            srem = jnp.sum(vals[r8:], axis=0)                    # (128,)
            rowid = jax.lax.broadcasted_iota(jnp.int32, (_SUB, _LANE), 0)
            acc = acc + jnp.where(rowid == 0, srem[None, :], 0.0)
        return acc

    def kernel(*refs):
        if has_weight:
            x_ref, t_ref, w_ref, o_ref = refs
        else:
            x_ref, t_ref, o_ref = refs
            w_ref = None

        k = pl.program_id(1)

        if out_accumulates:
            @pl.when(k == 0)
            def _():
                o_ref[...] = jnp.zeros_like(o_ref)

        def chunk_vals(s, row_start, length, apply_mask):
            x = x_ref[s, pl.ds(row_start, length), :].astype(jnp.float32)
            t = t_ref[s, pl.ds(row_start, length), :].astype(jnp.float32)
            # Single-EUP sigmoid: sigmoid(x) = 0.5 * tanh(x/2) + 0.5.
            p = 0.5 * jnp.tanh(0.5 * x) + 0.5
            if has_weight:
                w = w_ref[s, pl.ds(row_start, length), :].astype(jnp.float32)
                p = p * w
                t = t * w
            if apply_mask:
                row = jax.lax.broadcasted_iota(jnp.int32, (length, _LANE), 0)
                lane = jax.lax.broadcasted_iota(jnp.int32, (length, _LANE), 1)
                idx = k * tile_elems + (row_start + row) * _LANE + lane
                valid = idx < d_valid
                # Mask BOTH p and t: out-of-bounds rows of a partial block
                # hold garbage (possibly NaN); padded lanes would otherwise
                # leak sigmoid(0)=0.5 into the preds sum.
                p = jnp.where(valid, p, 0.0)
                t = jnp.where(valid, t, 0.0)
            return p * t, p, t

        def sample_sums(s, apply_mask):
            zero = jnp.zeros((_SUB, _LANE), jnp.float32)
            accs = (zero, zero, zero)                     # (pt, p, t)
            n_full = tile_r // _CHUNK_ROWS
            rem = tile_r - n_full * _CHUNK_ROWS

            def step(accs, row_start, length):
                a_pt, a_p, a_t = accs
                pt, p, t = chunk_vals(s, row_start, length, apply_mask)
                return (fold_rows(pt, a_pt), fold_rows(p, a_p),
                        fold_rows(t, a_t))

            if n_full > 0:
                def body(c, accs):
                    start = pl.multiple_of(c * _CHUNK_ROWS, _CHUNK_ROWS)
                    return step(accs, start, _CHUNK_ROWS)
                accs = jax.lax.fori_loop(0, n_full, body, accs)
            if rem:
                accs = step(accs, n_full * _CHUNK_ROWS, rem)
            return accs

        def per_sample(s, apply_mask):
            a_pt, a_p, a_t = sample_sums(s, apply_mask)
            if out_accumulates:                 # bn == 1, reduction across k
                o_ref[0, s] += a_pt
                o_ref[1, s] += a_p
                o_ref[2, s] += a_t
            else:                               # single k tile: direct store
                o_ref[0, s] = a_pt
                o_ref[1, s] = a_p
                o_ref[2, s] = a_t

        def run(apply_mask):
            if bn == 1:
                per_sample(0, apply_mask)
            else:
                @pl.loop(0, bn)
                def _(s):
                    per_sample(s, apply_mask)

        if needs_mask and num_k == 1:
            run(True)                           # the only tile is the boundary
        elif needs_mask:
            is_last = k == num_k - 1            # only the last tile pays the mask

            @pl.when(is_last)
            def _():
                run(True)

            @pl.when(jnp.logical_not(is_last))
            def _():
                run(False)
        else:
            run(False)

    return kernel


@functools.partial(jax.jit, static_argnames=("size_average",))
def dice_loss(logits, target, weight=None, size_average=True):
    """JAX/Pallas equivalent of DiceLoss.forward(input, target, weight)."""
    n = logits.shape[0]
    x = logits.reshape(n, -1)
    d = x.shape[1]

    rows, tile_r, bn, num_k = _choose_tiling(n, d)
    if num_k * tile_r * _LANE >= 2 ** 31:
        raise ValueError("per-sample element count too large for int32 indexing")
    pad = rows * _LANE - d
    needs_mask = (d % (tile_r * _LANE)) != 0
    has_weight = weight is not None

    def prep(a):
        a = a.reshape(n, -1)
        if pad:
            a = jnp.pad(a, ((0, 0), (0, pad)))   # only to next multiple of 128
        return a.reshape(n, rows, _LANE)          # native dtype, lane-dense

    operands = [prep(x), prep(target)]
    if has_weight:
        operands.append(prep(weight))

    kernel = _make_kernel(bn, tile_r, num_k, d, needs_mask, has_weight)
    in_spec = pl.BlockSpec((bn, tile_r, _LANE), lambda i, k: (i, k, 0))

    partials = pl.pallas_call(
        kernel,
        out_shape=jax.ShapeDtypeStruct((3, n, _SUB, _LANE), jnp.float32),
        grid=(-(-n // bn), num_k),
        in_specs=[in_spec] * len(operands),
        out_specs=pl.BlockSpec((3, bn, _SUB, _LANE), lambda i, k: (0, i, 0, 0)),
        compiler_params=pltpu.CompilerParams(
            dimension_semantics=("parallel", "arbitrary"),
            vmem_limit_bytes=_VMEM_LIMIT),
    )(*operands)

    sums = jnp.sum(partials, axis=(2, 3))         # (3, N) tiny XLA reduce
    inter, psum, tsum = sums[0], sums[1], sums[2]
    scores = 2.0 * (inter + 1.0) / (psum + tsum + 1.0)
    score = jnp.sum(scores)
    if size_average:
        score = score / n
    score = jnp.clip(score, 0.0, 1.0)
    return 1.0 - score


if __name__ == "__main__":
    key = jax.random.PRNGKey(0)
    k1, k2, k3 = jax.random.split(key, 3)

    def ref_loss(logits, trues, w=None, size_average=True):
        num = logits.shape[0]
        p = jax.nn.sigmoid(logits.reshape(num, -1).astype(jnp.float32))
        tt = trues.reshape(num, -1).astype(jnp.float32)
        if w is not None:
            wv = w.reshape(num, -1).astype(jnp.float32)
            p = p * wv
            tt = tt * wv
        inter = jnp.sum(p * tt, axis=1)
        scores = 2.0 * (inter + 1.0) / (jnp.sum(p, 1) + jnp.sum(tt, 1) + 1.0)
        s = jnp.sum(scores)
        if size_average:
            s = s / num
        return 1.0 - jnp.clip(s, 0.0, 1.0)

    def check(name, got, want, atol):
        got = jax.block_until_ready(got)
        assert jnp.allclose(got, want, atol=atol, rtol=atol), (name, got, want)

    # 1) Small NCHW logits, no weight (packed-sample path, no mask).
    x = jax.random.normal(k1, (2, 4, 16, 16), dtype=jnp.float32)
    target = (jax.random.uniform(k2, (2, 4, 16, 16)) > 0.5).astype(jnp.float32)
    weight = jax.random.uniform(k3, (2, 4, 16, 16), dtype=jnp.float32)
    check("no_weight", dice_loss(x, target), ref_loss(x, target), 2e-5)

    # 2) Weighted path (3-input kernel; weight applied to preds and trues).
    check("weighted", dice_loss(x, target, weight),
          ref_loss(x, target, weight), 2e-5)

    # 3) bf16 logits streamed natively, D % 128 != 0 (lane-tail mask).
    xb = jax.random.normal(k1, (2, 3, 10, 10), dtype=jnp.bfloat16)
    tb = (jax.random.uniform(k2, (2, 3, 10, 10)) > 0.5).astype(jnp.float32)
    check("bf16_ragged", dice_loss(xb, tb),
          ref_loss(xb.astype(jnp.float32), tb), 2e-5)

    # 4) D large enough for two row tiles (accumulation + pl.when-gated mask).
    xm = jax.random.normal(k1, (2, 3, 500, 400), dtype=jnp.float32)
    tgm = (jax.random.uniform(k2, (2, 3, 500, 400)) > 0.5).astype(jnp.float32)
    check("multi_tile", dice_loss(xm, tgm), ref_loss(xm, tgm), 1e-4)

    # 5) Single sample, ragged row count (chunk remainder + sub-8 fold tail).
    xs = jax.random.normal(k1, (1, 4, 157, 159), dtype=jnp.float32)
    tgs = (jax.random.uniform(k2, (1, 4, 157, 159)) > 0.5).astype(jnp.float32)
    check("ragged_rows", dice_loss(xs, tgs), ref_loss(xs, tgs), 1e-4)

    print("KERNEL_OK")
</pallas_src>

<mosaic_0001>
module attributes {stable_mosaic.version = 11 : i64} {
  func.func @kernel(%arg0: i32, %arg1: i32, %arg2: memref<2x8x128xf32, #tpu.memory_space<vmem>>, %arg3: memref<2x8x128xf32, #tpu.memory_space<vmem>>, %arg4: memref<3x2x8x128xf32, #tpu.memory_space<vmem>>) attributes {dimension_semantics = [#tpu.dimension_semantics<parallel>, #tpu.dimension_semantics<arbitrary>], iteration_bounds = array<i64: 1, 1>, scalar_prefetch = 0 : i64, scratch_operands = 0 : i64, tpu.core_type = #tpu.core_type<tc>, window_params = [{transform_indices = @transform_0, window_bounds = array<i64: 2, 8, 128>}, {transform_indices = @transform_1, window_bounds = array<i64: 2, 8, 128>}, {transform_indices = @transform_2, window_bounds = array<i64: 3, 2, 8, 128>}]} {
    %c0_i32 = arith.constant 0 : i32
    %c2_i32 = arith.constant 2 : i32
    %0 = arith.addi %c0_i32, %c2_i32 : i32
    %c1_i32 = arith.constant 1 : i32
    scf.for %arg5 = %c0_i32 to %0 step %c1_i32  : i32 {
      %c1_i32_1 = arith.constant 1 : i32
      %1 = arith.muli %arg5, %c1_i32_1 : i32
      %c0_i32_2 = arith.constant 0 : i32
      %2 = arith.addi %c0_i32_2, %1 : i32
      %cst = arith.constant 0.000000e+00 : f32
      %3 = vector.broadcast %cst : f32 to vector<8x128xf32>
      %4 = arith.index_cast %2 : i32 to index
      %c0 = arith.constant 0 : index
      %c0_3 = arith.constant 0 : index
      %5 = vector.load %arg2[%4, %c0, %c0_3] : memref<2x8x128xf32, #tpu.memory_space<vmem>>, vector<1x8x128xf32>
      %6 = vector.shape_cast %5 : vector<1x8x128xf32> to vector<8x128xf32>
      %7 = arith.index_cast %2 : i32 to index
      %c0_4 = arith.constant 0 : index
      %c0_5 = arith.constant 0 : index
      %8 = vector.load %arg3[%7, %c0_4, %c0_5] : memref<2x8x128xf32, #tpu.memory_space<vmem>>, vector<1x8x128xf32>
      %9 = vector.shape_cast %8 : vector<1x8x128xf32> to vector<8x128xf32>
      %cst_6 = arith.constant 5.000000e-01 : f32
      %10 = vector.broadcast %cst_6 : f32 to vector<8x128xf32>
      %11 = arith.mulf %10, %6 : vector<8x128xf32>
      %12 = math.tanh %11 : vector<8x128xf32>
      %cst_7 = arith.constant 5.000000e-01 : f32
      %13 = vector.broadcast %cst_7 : f32 to vector<8x128xf32>
      %14 = arith.mulf %13, %12 : vector<8x128xf32>
      %cst_8 = arith.constant 5.000000e-01 : f32
      %15 = vector.broadcast %cst_8 : f32 to vector<8x128xf32>
      %16 = arith.addf %14, %15 : vector<8x128xf32>
      %17 = arith.mulf %16, %9 : vector<8x128xf32>
      %18 = vector.shape_cast %17 : vector<8x128xf32> to vector<1x8x128xf32>
      %cst_9 = arith.constant dense<0.000000e+00> : vector<8x128xf32>
      %19 = vector.multi_reduction <add>, %18, %cst_9 [0] : vector<1x8x128xf32> to vector<8x128xf32>
      %20 = arith.addf %3, %19 : vector<8x128xf32>
      %21 = vector.shape_cast %16 : vector<8x128xf32> to vector<1x8x128xf32>
      %cst_10 = arith.constant dense<0.000000e+00> : vector<8x128xf32>
      %22 = vector.multi_reduction <add>, %21, %cst_10 [0] : vector<1x8x128xf32> to vector<8x128xf32>
      %23 = arith.addf %3, %22 : vector<8x128xf32>
      %24 = vector.shape_cast %9 : vector<8x128xf32> to vector<1x8x128xf32>
      %cst_11 = arith.constant dense<0.000000e+00> : vector<8x128xf32>
      %25 = vector.multi_reduction <add>, %24, %cst_11 [0] : vector<1x8x128xf32> to vector<8x128xf32>
      %26 = arith.addf %3, %25 : vector<8x128xf32>
      %c0_12 = arith.constant 0 : index
      %27 = arith.index_cast %2 : i32 to index
      %c0_13 = arith.constant 0 : index
      %c0_14 = arith.constant 0 : index
      %28 = vector.load %arg4[%c0_12, %27, %c0_13, %c0_14] : memref<3x2x8x128xf32, #tpu.memory_space<vmem>>, vector<1x1x8x128xf32>
      %29 = vector.shape_cast %28 : vector<1x1x8x128xf32> to vector<8x128xf32>
      %30 = vector.shape_cast %20 : vector<8x128xf32> to vector<1x1x8x128xf32>
      tpu.vector_store %arg4[%c0_12, %27, %c0_13, %c0_14], %30 {strides = array<i32>} : memref<3x2x8x128xf32, #tpu.memory_space<vmem>>, vector<1x1x8x128xf32>,
      %c1 = arith.constant 1 : index
      %31 = arith.index_cast %2 : i32 to index
      %c0_15 = arith.constant 0 : index
      %c0_16 = arith.constant 0 : index
      %32 = vector.load %arg4[%c1, %31, %c0_15, %c0_16] : memref<3x2x8x128xf32, #tpu.memory_space<vmem>>, vector<1x1x8x128xf32>
      %33 = vector.shape_cast %32 : vector<1x1x8x128xf32> to vector<8x128xf32>
      %34 = vector.shape_cast %23 : vector<8x128xf32> to vector<1x1x8x128xf32>
      tpu.vector_store %arg4[%c1, %31, %c0_15, %c0_16], %34 {strides = array<i32>} : memref<3x2x8x128xf32, #tpu.memory_space<vmem>>, vector<1x1x8x128xf32>,
      %c2 = arith.constant 2 : index
      %35 = arith.index_cast %2 : i32 to index
      %c0_17 = arith.constant 0 : index
      %c0_18 = arith.constant 0 : index
      %36 = vector.load %arg4[%c2, %35, %c0_17, %c0_18] : memref<3x2x8x128xf32, #tpu.memory_space<vmem>>, vector<1x1x8x128xf32>
      %37 = vector.shape_cast %36 : vector<1x1x8x128xf32> to vector<8x128xf32>
      %38 = vector.shape_cast %26 : vector<8x128xf32> to vector<1x1x8x128xf32>
      tpu.vector_store %arg4[%c2, %35, %c0_17, %c0_18], %38 {strides = array<i32>} : memref<3x2x8x128xf32, #tpu.memory_space<vmem>>, vector<1x1x8x128xf32>,
    }
    %c2_i32_0 = arith.constant 2 : i32
    return
  }
  func.func @transform_0(%arg0: i32, %arg1: i32) -> (i32, i32, i32) {
    %c0_i32 = arith.constant 0 : i32
    %c0_i32_0 = arith.constant 0 : i32
    return %arg0, %arg1, %c0_i32 : i32, i32, i32
  }
  func.func @transform_1(%arg0: i32, %arg1: i32) -> (i32, i32, i32) {
    %c0_i32 = arith.constant 0 : i32
    %c0_i32_0 = arith.constant 0 : i32
    return %arg0, %arg1, %c0_i32 : i32, i32, i32
  }
  func.func @transform_2(%arg0: i32, %arg1: i32) -> (i32, i32, i32, i32) {
    %c0_i32 = arith.constant 0 : i32
    %c0_i32_0 = arith.constant 0 : i32
    %c0_i32_1 = arith.constant 0 : i32
    %c0_i32_2 = arith.constant 0 : i32
    return %c0_i32, %arg0, %c0_i32_0, %c0_i32_1 : i32, i32, i32, i32
  }
}

</mosaic_0001>

<llo_original>
// kernel: dice_loss.1
$region0: #{dice_loss.1}
  #allocation0 [shape = 'u32[]', space=smem, size = 0x4, offset = 0x4, fixed_abs, tag = 'smem constant byte address 0x4 - core index']
  #allocation1 [shape = 'u32[72,128]{1,0:T(1,128)}', space=vmem, size = 0x9000, scoped, tag = 'internal scratch']
  %s0 = inlined_call_operand.vmem [shape: f32[2,8,128], index: 0, kind: input, shape index: {}]
  %s1 = inlined_call_operand.vmem [shape: f32[2,8,128], index: 1, kind: input, shape index: {}]
  %s2 = inlined_call_operand.vmem [shape: f32[3,2,8,128], index: 2, kind: output, shape index: {}]
  %s3 = sld [smem:[#allocation0]]
  $region25: #{dice_loss.1} parent=0
    _
  %s5 = ssub.s32 1, %s3
  %s6 = scalar_select 0, %s5, %s3
  // Predicated region
  $region2: #{dice_loss.1} parent=0 // pred_check
    _
  $region3: #{dice_loss.1} parent=0 // pred_check_branch
    %8 = sbr.rel (0) target = $region5
  $region4: #{dice_loss.1} parent=0 // pred_region
    _
  $region5: #{dice_loss.1} parent=0 // pred_fallthru
    _
  // Predicated region
  $region6: #{dice_loss.1} parent=0 // pred_check
    _
  $region7: #{dice_loss.1} parent=0 // pred_check_branch
    %10 = sbr.rel (0) target = $region9
  $region8: #{dice_loss.1} parent=0 // pred_region
    _
  $region9: #{dice_loss.1} parent=0 // pred_fallthru
    _
  loop: start=0, step=1, limit=2
  $region10: #{dice_loss.1} parent=0 // loop_pre_header
    _
  $region11: #{dice_loss.1} parent=0 // loop_header
    %s12 = sphi 0, %s16
    %p13 = scmp.ge.s32.totalorder %s12, 2
  $region12: #{dice_loss.1} parent=0 // loop_header_branch
    %15 = sbr.rel (%p13) target = $region16
  $region13: #{dice_loss.1} parent=0 // loop_body
    %s17 = smul.u32 %s12, 8
    %s18 = scalar_lea.vmem %s0, %s17
    %v19 = vld [vmem:[%s18] sm:$0xff]
    %s20 = scalar_lea.vmem %s1, %s17
    %v21 = vld [vmem:[%s20] sm:$0xff]
    %v22 = vmul.f32 %v19, 0.5
    %v23 = vtanh.pop %v22
    %v24 = vmul.f32 %v23, 0.5
    %v25 = vadd.f32 %v24, 0.5
    %v26 = vmul.f32 %v25, %v21
    %v27 = vadd.f32 %v26, 0.0
    %v28 = vadd.f32 %v27, 0.0
    %v29 = vadd.f32 %v25, 0.0
    %v30 = vadd.f32 %v29, 0.0
    %v31 = vadd.f32 %v21, 0.0
    %v32 = vadd.f32 %v31, 0.0
    %s33 = scalar_lea.vmem %s2, %s17
    %34 = vst [vmem:[%s33] sm:$0xff] %v28
    %s35 = sadd.s32 %s17, 16
    %s36 = scalar_lea.vmem %s2, %s35
    %37 = vst [vmem:[%s36] sm:$0xff] %v30
    %s38 = sadd.s32 %s17, 32
    %s39 = scalar_lea.vmem %s2, %s38
    %40 = vst [vmem:[%s39] sm:$0xff] %v32
  $region14: #{dice_loss.1} parent=0 // loop_footer
    %s16 = sadd.s32 1, %s12
  $region15: #{dice_loss.1} parent=0 // loop_footer_branch
    %11 = sbr.rel target = $region11
  $region16: #{dice_loss.1} parent=0 // loop_exit
    _
  // Predicated region
  $region17: #{dice_loss.1} parent=0 // pred_check
    _
  $region18: #{dice_loss.1} parent=0 // pred_check_branch
    %42 = sbr.rel (0) target = $region20
  $region19: #{dice_loss.1} parent=0 // pred_region
    _
  $region20: #{dice_loss.1} parent=0 // pred_fallthru
    _
  // Predicated region
  $region21: #{dice_loss.1} parent=0 // pred_check
    _
  $region22: #{dice_loss.1} parent=0 // pred_check_branch
    %44 = sbr.rel (0) target = $region24
  $region23: #{dice_loss.1} parent=0 // pred_region
    _
  $region24: #{dice_loss.1} parent=0 // pred_fallthru
    _

</llo_original>
